<compile_context>
chip_gen: v5e
topology: v5e:2x2
jax: 0.10.0
libtpu: 0.0.40
codegen_flags: <defaults>
</compile_context>

<pallas_src>
import jax
import jax.numpy as jnp
from jax.experimental import pallas as pl
from jax.experimental.pallas import tpu as pltpu


# ----------------------------- model config ---------------------------------
EMBEDDING_SIZES = [(10, 4), (7, 3), (5, 2)]     # (num_categories, emb_dim)
NUM_EMB = sum(nf for _, nf in EMBEDDING_SIZES)  # 9
NUM_CONT = 3
N_IN = NUM_EMB + NUM_CONT                       # 12
LAYERS = [32, 16]
OUTPUT_SIZE = 2
OUT_PAD = 128                                   # lane-dense padded output width
BN_EPS = 1e-5

BATCH = 32


# ------------------------------- kernel --------------------------------------
def tabular_mlp_kernel(x_ref, w1_ref, b1_ref, w2_ref, b2_ref, w3_ref, b3_ref,
                       out_ref):
    # Layer 1: Linear(12 -> 32) (bn_cont pre-folded into w1/b1), ReLU
    h = jnp.dot(x_ref[...], w1_ref[...],
                preferred_element_type=jnp.float32) + b1_ref[...]
    h = jnp.maximum(h, 0.0)

    # Layer 2: Linear(32 -> 16) (bn1 pre-folded into w2/b2), ReLU
    h = jnp.dot(h, w2_ref[...],
                preferred_element_type=jnp.float32) + b2_ref[...]
    h = jnp.maximum(h, 0.0)

    # Output head: Linear(16 -> OUT_PAD) (bn2 pre-folded; zero-padded to 128
    # lanes so the store is a full, unmasked vst).
    out_ref[...] = jnp.dot(h, w3_ref[...],
                           preferred_element_type=jnp.float32) + b3_ref[...]


# ------------------------------- wrapper --------------------------------------
def _bn_scale_bias(gamma, beta, mean, var, eps=BN_EPS):
    scale = gamma / jnp.sqrt(var + eps)
    bias = beta - mean * scale
    return scale, bias


@jax.jit
def tabular_forward(x_cat, x_cont, params):
    # --- glue: embedding gather + concat with raw continuous features ---
    embs = [params["emb"][j][x_cat[:, j]] for j in range(len(EMBEDDING_SIZES))]
    x_in = jnp.concatenate(embs + [x_cont], axis=1)          # (B, 12), f32

    # --- fold BatchNorms into adjacent Linear weights (eval mode) ---
    s_c, c_c = _bn_scale_bias(*params["bn_cont"])            # (NUM_CONT,)
    s_1, c_1 = _bn_scale_bias(*params["bn1"])                # (32,)
    s_2, c_2 = _bn_scale_bias(*params["bn2"])                # (16,)

    w1 = params["w1"]                                        # (12, 32)
    w1e, w1c = w1[:NUM_EMB], w1[NUM_EMB:]
    w1f = jnp.concatenate([w1e, s_c[:, None] * w1c], axis=0)  # (12, 32)
    b1f = (params["b1"] + c_c @ w1c)[None, :]                 # (1, 32)

    w2f = s_1[:, None] * params["w2"]                         # (32, 16)
    b2f = (params["b2"] + c_1 @ params["w2"])[None, :]        # (1, 16)

    w3f = s_2[:, None] * params["w3"]                         # (16, 2)
    b3f = params["b3"] + c_2 @ params["w3"]                   # (2,)

    # Pad the head to 128 output lanes (zeros) for a lane-dense store.
    w3p = jnp.zeros((LAYERS[-1], OUT_PAD), jnp.float32).at[:, :OUTPUT_SIZE].set(w3f)
    b3p = jnp.zeros((1, OUT_PAD), jnp.float32).at[:, :OUTPUT_SIZE].set(b3f)

    B = x_in.shape[0]

    out_padded = pl.pallas_call(
        tabular_mlp_kernel,
        out_shape=jax.ShapeDtypeStruct((B, OUT_PAD), jnp.float32),
        # No grid: a single invocation; every input/output is a full-array
        # VMEM block (total working set is a few KB, fine on v5e/v6e/v7x).
    )(x_in, w1f, b1f, w2f, b2f, w3p, b3p)

    return out_padded[:, :OUTPUT_SIZE]


# --------------------------- reference (pure JAX) -----------------------------
def tabular_forward_ref(x_cat, x_cont, params):
    embs = [params["emb"][j][x_cat[:, j]] for j in range(len(EMBEDDING_SIZES))]
    x = jnp.concatenate(embs, axis=1)

    g, b, m, v = params["bn_cont"]
    xc = (x_cont - m) / jnp.sqrt(v + BN_EPS) * g + b
    x = jnp.concatenate([x, xc], axis=1)

    h = x @ params["w1"] + params["b1"]
    h = jnp.maximum(h, 0.0)
    g, b, m, v = params["bn1"]
    h = (h - m) / jnp.sqrt(v + BN_EPS) * g + b

    h = h @ params["w2"] + params["b2"]
    h = jnp.maximum(h, 0.0)
    g, b, m, v = params["bn2"]
    h = (h - m) / jnp.sqrt(v + BN_EPS) * g + b

    return h @ params["w3"] + params["b3"]


# ----------------------------- param init -------------------------------------
def init_params(key):
    ks = iter(jax.random.split(key, 32))

    def bn_params(k, n):
        k1, k2, k3, k4 = jax.random.split(k, 4)
        gamma = 1.0 + 0.1 * jax.random.normal(k1, (n,), jnp.float32)
        beta = 0.1 * jax.random.normal(k2, (n,), jnp.float32)
        mean = 0.1 * jax.random.normal(k3, (n,), jnp.float32)
        var = 1.0 + 0.1 * jax.random.uniform(k4, (n,), jnp.float32)
        return (gamma, beta, mean, var)

    params = {
        "emb": [
            jax.random.normal(next(ks), (ni, nf), jnp.float32)
            for ni, nf in EMBEDDING_SIZES
        ],
        "bn_cont": bn_params(next(ks), NUM_CONT),
        "w1": jax.random.normal(next(ks), (N_IN, LAYERS[0]), jnp.float32)
        * (1.0 / jnp.sqrt(N_IN)),
        "b1": 0.01 * jax.random.normal(next(ks), (LAYERS[0],), jnp.float32),
        "bn1": bn_params(next(ks), LAYERS[0]),
        "w2": jax.random.normal(next(ks), (LAYERS[0], LAYERS[1]), jnp.float32)
        * (1.0 / jnp.sqrt(LAYERS[0])),
        "b2": 0.01 * jax.random.normal(next(ks), (LAYERS[1],), jnp.float32),
        "bn2": bn_params(next(ks), LAYERS[1]),
        "w3": jax.random.normal(next(ks), (LAYERS[1], OUTPUT_SIZE), jnp.float32)
        * (1.0 / jnp.sqrt(LAYERS[1])),
        "b3": 0.01 * jax.random.normal(next(ks), (OUTPUT_SIZE,), jnp.float32),
    }
    return params


# --------------------------------- main ----------------------------------------
if __name__ == "__main__":
    key = jax.random.PRNGKey(0)
    kp, kc1, kc2 = jax.random.split(key, 3)

    params = init_params(kp)

    # categorical indices, one column per embedding table
    x_cat = jnp.stack(
        [
            jax.random.randint(jax.random.fold_in(kc1, j), (BATCH,), 0, ni)
            for j, (ni, _) in enumerate(EMBEDDING_SIZES)
        ],
        axis=1,
    ).astype(jnp.int32)                                     # (B, 3)
    x_cont = jax.random.normal(kc2, (BATCH, NUM_CONT), jnp.float32)

    out = tabular_forward(x_cat, x_cont, params)
    out = jax.block_until_ready(out)

    ref = tabular_forward_ref(x_cat, x_cont, params)
    assert out.shape == (BATCH, OUTPUT_SIZE), out.shape
    assert jnp.allclose(out, ref, atol=1e-4, rtol=1e-4), (
        "mismatch vs reference: "
        f"max abs err = {float(jnp.max(jnp.abs(out - ref)))}"
    )

    # TODO(synk): training-mode Dropout / batch-statistics BatchNorm not
    # implemented; eval-mode (inference) semantics are reproduced instead.
    print("KERNEL_OK")
</pallas_src>

<mosaic_0001>
module attributes {stable_mosaic.version = 11 : i64} {
  func.func @tabular_mlp_kernel(%arg0: memref<32x12xf32, #tpu.memory_space<vmem>>, %arg1: memref<12x32xf32, #tpu.memory_space<vmem>>, %arg2: memref<1x32xf32, #tpu.memory_space<vmem>>, %arg3: memref<32x16xf32, #tpu.memory_space<vmem>>, %arg4: memref<1x16xf32, #tpu.memory_space<vmem>>, %arg5: memref<16x128xf32, #tpu.memory_space<vmem>>, %arg6: memref<1x128xf32, #tpu.memory_space<vmem>>, %arg7: memref<32x128xf32, #tpu.memory_space<vmem>>) attributes {dimension_semantics = [], scalar_prefetch = 0 : i64, scratch_operands = 0 : i64, tpu.core_type = #tpu.core_type<tc>} {
    %c0 = arith.constant 0 : index
    %c0_0 = arith.constant 0 : index
    %0 = vector.load %arg0[%c0, %c0_0] : memref<32x12xf32, #tpu.memory_space<vmem>>, vector<32x12xf32>
    %c0_1 = arith.constant 0 : index
    %c0_2 = arith.constant 0 : index
    %1 = vector.load %arg1[%c0_1, %c0_2] : memref<12x32xf32, #tpu.memory_space<vmem>>, vector<12x32xf32>
    %cst = arith.constant dense<0.000000e+00> : vector<32x32xf32>
    %2 = tpu.matmul %0, %1, %cst {dimension_numbers = #tpu.dot_dimension_numbers<[1], [0], [0], [1], [0, 0, 1, 1], [], []>} : vector<32x12xf32>, vector<12x32xf32>, vector<32x32xf32> -> vector<32x32xf32>
    %c0_3 = arith.constant 0 : index
    %c0_4 = arith.constant 0 : index
    %3 = vector.load %arg2[%c0_3, %c0_4] : memref<1x32xf32, #tpu.memory_space<vmem>>, vector<1x32xf32>
    %4 = vector.broadcast %3 : vector<1x32xf32> to vector<32x32xf32>
    %5 = arith.addf %2, %4 : vector<32x32xf32>
    %cst_5 = arith.constant 0.000000e+00 : f32
    %6 = vector.broadcast %cst_5 : f32 to vector<32x32xf32>
    %7 = arith.maximumf %5, %6 : vector<32x32xf32>
    %c0_6 = arith.constant 0 : index
    %c0_7 = arith.constant 0 : index
    %8 = vector.load %arg3[%c0_6, %c0_7] : memref<32x16xf32, #tpu.memory_space<vmem>>, vector<32x16xf32>
    %cst_8 = arith.constant dense<0.000000e+00> : vector<32x16xf32>
    %9 = tpu.matmul %7, %8, %cst_8 {dimension_numbers = #tpu.dot_dimension_numbers<[1], [0], [0], [1], [0, 0, 1, 1], [], []>} : vector<32x32xf32>, vector<32x16xf32>, vector<32x16xf32> -> vector<32x16xf32>
    %c0_9 = arith.constant 0 : index
    %c0_10 = arith.constant 0 : index
    %10 = vector.load %arg4[%c0_9, %c0_10] : memref<1x16xf32, #tpu.memory_space<vmem>>, vector<1x16xf32>
    %11 = vector.broadcast %10 : vector<1x16xf32> to vector<32x16xf32>
    %12 = arith.addf %9, %11 : vector<32x16xf32>
    %cst_11 = arith.constant 0.000000e+00 : f32
    %13 = vector.broadcast %cst_11 : f32 to vector<32x16xf32>
    %14 = arith.maximumf %12, %13 : vector<32x16xf32>
    %c0_12 = arith.constant 0 : index
    %c0_13 = arith.constant 0 : index
    %15 = vector.load %arg5[%c0_12, %c0_13] : memref<16x128xf32, #tpu.memory_space<vmem>>, vector<16x128xf32>
    %cst_14 = arith.constant dense<0.000000e+00> : vector<32x128xf32>
    %16 = tpu.matmul %14, %15, %cst_14 {dimension_numbers = #tpu.dot_dimension_numbers<[1], [0], [0], [1], [0, 0, 1, 1], [], []>} : vector<32x16xf32>, vector<16x128xf32>, vector<32x128xf32> -> vector<32x128xf32>
    %c0_15 = arith.constant 0 : index
    %c0_16 = arith.constant 0 : index
    %17 = vector.load %arg6[%c0_15, %c0_16] : memref<1x128xf32, #tpu.memory_space<vmem>>, vector<1x128xf32>
    %18 = vector.broadcast %17 : vector<1x128xf32> to vector<32x128xf32>
    %19 = arith.addf %16, %18 : vector<32x128xf32>
    %c0_17 = arith.constant 0 : index
    %c0_18 = arith.constant 0 : index
    %20 = vector.load %arg7[%c0_17, %c0_18] : memref<32x128xf32, #tpu.memory_space<vmem>>, vector<32x128xf32>
    tpu.vector_store %arg7[%c0_17, %c0_18], %19 {strides = array<i32>} : memref<32x128xf32, #tpu.memory_space<vmem>>, vector<32x128xf32>,
    return
  }
}

</mosaic_0001>

<llo_original>
// kernel: tabular_forward.1
$region0: #{tabular_forward.1}
  #allocation0 [shape = 'u32[]', space=smem, size = 0x4, offset = 0x4, fixed_abs, tag = 'smem constant byte address 0x4 - core index']
  #allocation1 [shape = 'u32[72,128]{1,0:T(1,128)}', space=vmem, size = 0x9000, scoped, tag = 'internal scratch']
  %s0 = inlined_call_operand.vmem [shape: f32[32,12], index: 0, kind: input, shape index: {}]
  %s1 = inlined_call_operand.vmem [shape: f32[12,32], index: 1, kind: input, shape index: {}]
  %s2 = inlined_call_operand.vmem [shape: f32[1,32], index: 2, kind: input, shape index: {}]
  %s3 = inlined_call_operand.vmem [shape: f32[32,16], index: 3, kind: input, shape index: {}]
  %s4 = inlined_call_operand.vmem [shape: f32[1,16], index: 4, kind: input, shape index: {}]
  %s5 = inlined_call_operand.vmem [shape: f32[16,128], index: 5, kind: input, shape index: {}]
  %s6 = inlined_call_operand.vmem [shape: f32[1,128], index: 6, kind: input, shape index: {}]
  %s7 = inlined_call_operand.vmem [shape: f32[32,128], index: 7, kind: output, shape index: {}]
  %s8 = sld [smem:[#allocation0]]
  $region38: #{tabular_forward.1} parent=0
    _
  %s10 = ssub.s32 1, %s8
  %s11 = scalar_select 0, %s10, %s8
  // Predicated region
  $region2: #{tabular_forward.1} parent=0 // pred_check
    _
  $region3: #{tabular_forward.1} parent=0 // pred_check_branch
    %13 = sbr.rel (0) target = $region5
  $region4: #{tabular_forward.1} parent=0 // pred_region
    _
  $region5: #{tabular_forward.1} parent=0 // pred_fallthru
    _
  // Predicated region
  $region6: #{tabular_forward.1} parent=0 // pred_check
    _
  $region7: #{tabular_forward.1} parent=0 // pred_check_branch
    %15 = sbr.rel (0) target = $region9
  $region8: #{tabular_forward.1} parent=0 // pred_region
    _
  $region9: #{tabular_forward.1} parent=0 // pred_fallthru
    _
  // Predicated region
  $region10: #{tabular_forward.1} parent=0 // pred_check
    _
  $region11: #{tabular_forward.1} parent=0 // pred_check_branch
    %17 = sbr.rel (0) target = $region13
  $region12: #{tabular_forward.1} parent=0 // pred_region
    _
  $region13: #{tabular_forward.1} parent=0 // pred_fallthru
    _
  // Predicated region
  $region14: #{tabular_forward.1} parent=0 // pred_check
    _
  $region15: #{tabular_forward.1} parent=0 // pred_check_branch
    %19 = sbr.rel (0) target = $region17
  $region16: #{tabular_forward.1} parent=0 // pred_region
    _
  $region17: #{tabular_forward.1} parent=0 // pred_fallthru
    _
  // Predicated region
  $region18: #{tabular_forward.1} parent=0 // pred_check
    _
  $region19: #{tabular_forward.1} parent=0 // pred_check_branch
    %21 = sbr.rel (0) target = $region21
  $region20: #{tabular_forward.1} parent=0 // pred_region
    _
  $region21: #{tabular_forward.1} parent=0 // pred_fallthru
    _
  // Predicated region
  $region22: #{tabular_forward.1} parent=0 // pred_check
    _
  $region23: #{tabular_forward.1} parent=0 // pred_check_branch
    %23 = sbr.rel (0) target = $region25
  $region24: #{tabular_forward.1} parent=0 // pred_region
    _
  $region25: #{tabular_forward.1} parent=0 // pred_fallthru
    _
  // Predicated region
  $region26: #{tabular_forward.1} parent=0 // pred_check
    _
  $region27: #{tabular_forward.1} parent=0 // pred_check_branch
    %25 = sbr.rel (0) target = $region29
  $region28: #{tabular_forward.1} parent=0 // pred_region
    _
  $region29: #{tabular_forward.1} parent=0 // pred_fallthru
    _
  %v26 = vld [vmem:[%s0] sm:$0xff]
  %v27 = vld [vmem:[%s0 + $0x8] sm:$0xff]
  %v28 = vld [vmem:[%s0 + $0x10] sm:$0xff]
  %v29 = vld [vmem:[%s0 + $0x18] sm:$0xff]
  %v30 = vld [vmem:[%s1] sm:$0xff]
  %v31 = vld [vmem:[%s1 + $0x8] sm:$0xf]
  %v32 = vld [vmem:[%s2] sm:$0x1]
  %v34 = vperm.slane %v32, 0
  %vm36 = vcmask 97280
  %v38 = vsel %vm36, %v26, 0
  %v41 = vsel %vm36, %v27, 0
  %v44 = vsel %vm36, %v28, 0
  %v47 = vsel %vm36, %v29, 0
  %vm49 = vcmask 1043456
  %v51 = vsel %vm49, %v31, 0
  %53 = vmatpush.msra.mxu0 0.0
  %54 = vmatpush.msra.mxu0 0.0
  %55 = vmatpush.msra.mxu0 0.0
  %56 = vmatpush.msra.mxu0 0.0
  %57 = vmatpush.msra.mxu0 0.0
  %58 = vmatpush.msra.mxu0 0.0
  %59 = vmatpush.msra.mxu0 0.0
  %60 = vmatpush.msra.mxu0 0.0
  %61 = vmatpush.msra.mxu0 0.0
  %62 = vmatpush.msra.mxu0 0.0
  %63 = vmatpush.msra.mxu0 0.0
  %64 = vmatpush.msra.mxu0 0.0
  %65 = vmatpush.msra.mxu0 0.0
  %66 = vmatpush.msra.mxu0 0.0
  %67 = vmatpush.msra.mxu0 %v51
  %68 = vmatpush.msra.mxu0 %v30
  %69 = vmatmul.f32.gmra.mxu0 %v38
  %v70 = vpop.f32.mrf.mxu0
  %v71 = vadd.f32 %v34, %v70
  %72 = vmatmul.f32.gmra.mxu0 %v41
  %v73 = vpop.f32.mrf.mxu0
  %v74 = vadd.f32 %v34, %v73
  %75 = vmatmul.f32.gmra.mxu0 %v44
  %v76 = vpop.f32.mrf.mxu0
  %v77 = vadd.f32 %v34, %v76
  %78 = vmatmul.f32.gmra.mxu0 %v47
  %v79 = vpop.f32.mrf.mxu0
  %v80 = vadd.f32 %v34, %v79
  %81 = vdwg.mxu0
  %v82 = vmax.f32 %v71, 0.0
  %v83 = vmax.f32 %v74, 0.0
  %v84 = vmax.f32 %v77, 0.0
  %v85 = vmax.f32 %v80, 0.0
  %v86 = vld [vmem:[%s3] sm:$0xff]
  %v87 = vld [vmem:[%s3 + $0x8] sm:$0xff]
  %v88 = vld [vmem:[%s3 + $0x10] sm:$0xff]
  %v89 = vld [vmem:[%s3 + $0x18] sm:$0xff]
  %v90 = vld [vmem:[%s4] sm:$0x1]
  %v92 = vperm.slane %v90, 0
  %vm94 = vcmask 261120
  %v96 = vsel %vm94, %v82, 0
  %v99 = vsel %vm94, %v83, 0
  %v102 = vsel %vm94, %v84, 0
  %v105 = vsel %vm94, %v85, 0
  %107 = vmatpush.msra.mxu0 0.0
  %108 = vmatpush.msra.mxu0 0.0
  %109 = vmatpush.msra.mxu0 0.0
  %110 = vmatpush.msra.mxu0 0.0
  %111 = vmatpush.msra.mxu0 0.0
  %112 = vmatpush.msra.mxu0 0.0
  %113 = vmatpush.msra.mxu0 0.0
  %114 = vmatpush.msra.mxu0 0.0
  %115 = vmatpush.msra.mxu0 0.0
  %116 = vmatpush.msra.mxu0 0.0
  %117 = vmatpush.msra.mxu0 0.0
  %118 = vmatpush.msra.mxu0 0.0
  %119 = vmatpush.msra.mxu0 %v89
  %120 = vmatpush.msra.mxu0 %v88
  %121 = vmatpush.msra.mxu0 %v87
  %122 = vmatpush.msra.mxu0 %v86
  %123 = vmatmul.f32.gmra.mxu0 %v96
  %v124 = vpop.f32.mrf.mxu0
  %v125 = vadd.f32 %v92, %v124
  %126 = vmatmul.f32.gmra.mxu0 %v99
  %v127 = vpop.f32.mrf.mxu0
  %v128 = vadd.f32 %v92, %v127
  %129 = vmatmul.f32.gmra.mxu0 %v102
  %v130 = vpop.f32.mrf.mxu0
  %v131 = vadd.f32 %v92, %v130
  %132 = vmatmul.f32.gmra.mxu0 %v105
  %v133 = vpop.f32.mrf.mxu0
  %v134 = vadd.f32 %v92, %v133
  %135 = vdwg.mxu0
  %v136 = vmax.f32 %v125, 0.0
  %v137 = vmax.f32 %v128, 0.0
  %v138 = vmax.f32 %v131, 0.0
  %v139 = vmax.f32 %v134, 0.0
  %v140 = vld [vmem:[%s5] sm:$0xff]
  %v141 = vld [vmem:[%s5 + $0x8] sm:$0xff]
  %v142 = vld [vmem:[%s6] sm:$0x1]
  %v144 = vperm.slane %v142, 0
  %vm146 = vcmask 130048
  %v148 = vsel %vm146, %v136, 0
  %v151 = vsel %vm146, %v137, 0
  %v154 = vsel %vm146, %v138, 0
  %v157 = vsel %vm146, %v139, 0
  %159 = vmatpush.msra.mxu0 0.0
  %160 = vmatpush.msra.mxu0 0.0
  %161 = vmatpush.msra.mxu0 0.0
  %162 = vmatpush.msra.mxu0 0.0
  %163 = vmatpush.msra.mxu0 0.0
  %164 = vmatpush.msra.mxu0 0.0
  %165 = vmatpush.msra.mxu0 0.0
  %166 = vmatpush.msra.mxu0 0.0
  %167 = vmatpush.msra.mxu0 0.0
  %168 = vmatpush.msra.mxu0 0.0
  %169 = vmatpush.msra.mxu0 0.0
  %170 = vmatpush.msra.mxu0 0.0
  %171 = vmatpush.msra.mxu0 0.0
  %172 = vmatpush.msra.mxu0 0.0
  %173 = vmatpush.msra.mxu0 %v141
  %174 = vmatpush.msra.mxu0 %v140
  %175 = vmatmul.f32.gmra.mxu0 %v148
  %v176 = vpop.f32.mrf.mxu0
  %v177 = vadd.f32 %v144, %v176
  %178 = vmatmul.f32.gmra.mxu0 %v151
  %v179 = vpop.f32.mrf.mxu0
  %v180 = vadd.f32 %v144, %v179
  %181 = vmatmul.f32.gmra.mxu0 %v154
  %v182 = vpop.f32.mrf.mxu0
  %v183 = vadd.f32 %v144, %v182
  %184 = vmatmul.f32.gmra.mxu0 %v157
  %v185 = vpop.f32.mrf.mxu0
  %v186 = vadd.f32 %v144, %v185
  %187 = vdwg.mxu0
  %188 = vst [vmem:[%s7] sm:$0xff] %v177
  %189 = vst [vmem:[%s7 + $0x8] sm:$0xff] %v180
  %190 = vst [vmem:[%s7 + $0x10] sm:$0xff] %v183
  %191 = vst [vmem:[%s7 + $0x18] sm:$0xff] %v186
  // Predicated region
  $region30: #{tabular_forward.1} parent=0 // pred_check
    _
  $region31: #{tabular_forward.1} parent=0 // pred_check_branch
    %193 = sbr.rel (0) target = $region33
  $region32: #{tabular_forward.1} parent=0 // pred_region
    _
  $region33: #{tabular_forward.1} parent=0 // pred_fallthru
    _
  // Predicated region
  $region34: #{tabular_forward.1} parent=0 // pred_check
    _
  $region35: #{tabular_forward.1} parent=0 // pred_check_branch
    %195 = sbr.rel (0) target = $region37
  $region36: #{tabular_forward.1} parent=0 // pred_region
    _
  $region37: #{tabular_forward.1} parent=0 // pred_fallthru
    _

</llo_original>
